<compile_context>
chip_gen: v7x
topology: tpu7x:2x2x1
jax: 0.10.0
libtpu: 0.0.40
codegen_flags: <defaults>
</compile_context>

<pallas_src>
import jax
import jax.numpy as jnp
from jax.experimental import pallas as pl
from jax.experimental.pallas import tpu as pltpu  # noqa: F401  (TPU backend)


def classifier_kernel(x_ref, w1_ref, b1_ref, w2_ref, b2_ref, o_ref):
    # FFNN4: Linear (bf16 MXU, f32 accumulate) + bias + ReLU in f32 (VPU).
    x_b = x_ref[...].astype(w1_ref.dtype)          # f32 -> bf16 cast in-kernel
    h = jnp.dot(x_b, w1_ref[...], preferred_element_type=jnp.float32)
    h = jnp.maximum(h + b1_ref[...], 0.0)
    # lin1: single activation cast right before the second dot.
    y = jnp.dot(h.astype(w2_ref.dtype), w2_ref[...],
                preferred_element_type=jnp.float32)
    o_ref[...] = y + b2_ref[...]                   # (B, n_spk) f32 store


def prepare_params(w1, b1, w2, b2):
    """One-time parameter prep (do this at init, NOT per forward call).

    Weights stored (in, out) as bf16 for the MXU; biases as (1, d) f32 rows.
    """
    return (w1.astype(jnp.bfloat16),
            b1.reshape(1, -1).astype(jnp.float32),
            w2.astype(jnp.bfloat16),
            b2.reshape(1, -1).astype(jnp.float32))


def classifier_forward(x, w1_b, b1_2d, w2_b, b2_2d):
    """x: (B, d_in) f32. Prepared params from `prepare_params`.

    Returns (B, n_speakers) f32. Flatten(start_dim=1) on a 2-D tensor is the
    identity, so the second linear's output is returned directly.
    """
    B, d_in = x.shape
    d_hid = w1_b.shape[1]
    n_spk = w2_b.shape[1]

    full = lambda shape: pl.BlockSpec(shape, lambda: (0,) * len(shape))

    bytes_accessed = (x.size * 4 + w1_b.size * 2 + w2_b.size * 2
                      + b1_2d.size * 4 + b2_2d.size * 4 + B * n_spk * 4)
    cost = pl.CostEstimate(
        flops=2 * B * (d_in * d_hid + d_hid * n_spk),
        transcendentals=0,
        bytes_accessed=bytes_accessed,
    )

    return pl.pallas_call(
        classifier_kernel,
        out_shape=jax.ShapeDtypeStruct((B, n_spk), jnp.float32),
        in_specs=[
            full((B, d_in)),
            full((d_in, d_hid)),
            full((1, d_hid)),
            full((d_hid, n_spk)),
            full((1, n_spk)),
        ],
        out_specs=full((B, n_spk)),
        cost_estimate=cost,
    )(x, w1_b, b1_2d, w2_b, b2_2d)


def init_params(key, d_in=512, d_hid=512, n_speakers=28):
    """Deterministic init matching nn.Linear's U(-1/sqrt(fan_in), 1/sqrt(fan_in))."""
    k1, k2, k3, k4 = jax.random.split(key, 4)
    bound1 = 1.0 / jnp.sqrt(d_in)
    bound2 = 1.0 / jnp.sqrt(d_hid)
    # stored as (in, out) so the kernel computes x @ W + b
    w1 = jax.random.uniform(k1, (d_in, d_hid), jnp.float32, -bound1, bound1)
    b1 = jax.random.uniform(k2, (d_hid,), jnp.float32, -bound1, bound1)
    w2 = jax.random.uniform(k3, (d_hid, n_speakers), jnp.float32, -bound2, bound2)
    b2 = jax.random.uniform(k4, (n_speakers,), jnp.float32, -bound2, bound2)
    return w1, b1, w2, b2


if __name__ == "__main__":
    key = jax.random.PRNGKey(0)
    kx, kp = jax.random.split(key)

    B, d_in, d_hid, n_speakers = 8, 512, 512, 28
    x = jax.random.normal(kx, (B, d_in), jnp.float32)
    w1, b1, w2, b2 = init_params(kp, d_in, d_hid, n_speakers)

    # One-time prep (amortized across calls in a real model).
    w1_b, b1_2d, w2_b, b2_2d = prepare_params(w1, b1, w2, b2)
    w1_b, b1_2d, w2_b, b2_2d = jax.block_until_ready((w1_b, b1_2d, w2_b, b2_2d))

    fwd = jax.jit(classifier_forward)
    y = fwd(x, w1_b, b1_2d, w2_b, b2_2d)
    y = jax.block_until_ready(y)
    assert y.shape == (B, n_speakers)

    # Reference (plain JAX) reproducing the kernel's bf16-in / f32-accumulate
    # numerics: bf16 operands for the dots, f32 accumulation and epilogue.
    # NOTE: the bf16 weight cast is a deliberate numerics change vs the f32
    # PyTorch Classifier (tolerance 5e-3).
    xb = x.astype(jnp.bfloat16).astype(jnp.float32)
    w1f = w1_b.astype(jnp.float32)
    w2f = w2_b.astype(jnp.float32)
    h_ref = jnp.maximum(xb @ w1f + b1, 0.0)
    h_ref = h_ref.astype(jnp.bfloat16).astype(jnp.float32)
    y_ref = h_ref @ w2f + b2
    assert jnp.allclose(y, y_ref, atol=5e-3, rtol=5e-3)

    print("KERNEL_OK")
</pallas_src>

<mosaic_0001>
module attributes {stable_mosaic.version = 11 : i64} {
  func.func @classifier_kernel(%arg0: memref<8x512xf32, #tpu.memory_space<vmem>>, %arg1: memref<512x512xbf16, #tpu.memory_space<vmem>>, %arg2: memref<1x512xf32, #tpu.memory_space<vmem>>, %arg3: memref<512x28xbf16, #tpu.memory_space<vmem>>, %arg4: memref<1x28xf32, #tpu.memory_space<vmem>>, %arg5: memref<8x28xf32, #tpu.memory_space<vmem>>) attributes {dimension_semantics = [], scalar_prefetch = 0 : i64, scratch_operands = 0 : i64, tpu.core_type = #tpu.core_type<tc>} {
    %c0 = arith.constant 0 : index
    %c0_0 = arith.constant 0 : index
    %0 = vector.load %arg0[%c0, %c0_0] : memref<8x512xf32, #tpu.memory_space<vmem>>, vector<8x512xf32>
    %1 = arith.truncf %0 : vector<8x512xf32> to vector<8x512xbf16>
    %c0_1 = arith.constant 0 : index
    %c0_2 = arith.constant 0 : index
    %2 = vector.load %arg1[%c0_1, %c0_2] : memref<512x512xbf16, #tpu.memory_space<vmem>>, vector<512x512xbf16>
    %cst = arith.constant dense<0.000000e+00> : vector<8x512xf32>
    %3 = tpu.matmul %1, %2, %cst {dimension_numbers = #tpu.dot_dimension_numbers<[1], [0], [0], [1], [0, 0, 1, 1], [], []>} : vector<8x512xbf16>, vector<512x512xbf16>, vector<8x512xf32> -> vector<8x512xf32>
    %c0_3 = arith.constant 0 : index
    %c0_4 = arith.constant 0 : index
    %4 = vector.load %arg2[%c0_3, %c0_4] : memref<1x512xf32, #tpu.memory_space<vmem>>, vector<1x512xf32>
    %5 = vector.broadcast %4 : vector<1x512xf32> to vector<8x512xf32>
    %6 = arith.addf %3, %5 : vector<8x512xf32>
    %cst_5 = arith.constant 0.000000e+00 : f32
    %7 = vector.broadcast %cst_5 : f32 to vector<8x512xf32>
    %8 = arith.maximumf %6, %7 : vector<8x512xf32>
    %9 = arith.truncf %8 : vector<8x512xf32> to vector<8x512xbf16>
    %c0_6 = arith.constant 0 : index
    %c0_7 = arith.constant 0 : index
    %10 = vector.load %arg3[%c0_6, %c0_7] : memref<512x28xbf16, #tpu.memory_space<vmem>>, vector<512x28xbf16>
    %cst_8 = arith.constant dense<0.000000e+00> : vector<8x28xf32>
    %11 = tpu.matmul %9, %10, %cst_8 {dimension_numbers = #tpu.dot_dimension_numbers<[1], [0], [0], [1], [0, 0, 1, 1], [], []>} : vector<8x512xbf16>, vector<512x28xbf16>, vector<8x28xf32> -> vector<8x28xf32>
    %c0_9 = arith.constant 0 : index
    %c0_10 = arith.constant 0 : index
    %12 = vector.load %arg4[%c0_9, %c0_10] : memref<1x28xf32, #tpu.memory_space<vmem>>, vector<1x28xf32>
    %13 = vector.broadcast %12 : vector<1x28xf32> to vector<8x28xf32>
    %14 = arith.addf %11, %13 : vector<8x28xf32>
    %c0_11 = arith.constant 0 : index
    %c0_12 = arith.constant 0 : index
    %15 = vector.load %arg5[%c0_11, %c0_12] : memref<8x28xf32, #tpu.memory_space<vmem>>, vector<8x28xf32>
    tpu.vector_store %arg5[%c0_11, %c0_12], %14 {strides = array<i32>} : memref<8x28xf32, #tpu.memory_space<vmem>>, vector<8x28xf32>,
    return
  }
}

</mosaic_0001>

<llo_original>
// kernel: classifier_forward.1
$region0: #{classifier_forward.1}
  #allocation0 [shape = 'u32[]', space=smem, size = 0x4, offset = 0x4, fixed_abs, tag = 'smem constant byte address 0x4 - core index']
  #allocation1 [shape = 'u32[144,128]{1,0:T(1,128)}', space=vmem, size = 0x12000, scoped, tag = 'internal scratch']
  %s0 = inlined_call_operand.vmem [shape: f32[8,512], index: 0, kind: input, shape index: {}]
  %s1 = inlined_call_operand.hbm [shape: bf16[512,512], index: 1, kind: input, shape index: {}]
  %s2 = inlined_call_operand.vmem [shape: f32[1,512], index: 2, kind: input, shape index: {}]
  %s3 = inlined_call_operand.vmem [shape: bf16[512,28], index: 3, kind: input, shape index: {}]
  %s4 = inlined_call_operand.vmem [shape: f32[1,28], index: 4, kind: input, shape index: {}]
  %s5 = inlined_call_operand.hbm [shape: f32[8,28], index: 5, kind: output, shape index: {}]
  %s6 = sld [smem:[#allocation0]]
  $region34: #{classifier_forward.1} parent=0
    _
  %s8 = ssub.s32 1, %s6
  %s9 = scalar_select 0, %s8, %s6
  $region1: #{classifier_forward.1} parent=0
    #allocation2 [shape = 'u8[524288]{0}', space=vmem, size = 0x80000, scoped, tag = 'input window, operand 1, single buffered']
    #allocation3 [shape = 's32[1]{0}', space=sflag, size = 0x4, scoped, tag = 'scoped memory for classifier_forward.1']
    #allocation4 [shape = 's32[1]{0}', space=sflag, size = 0x4, scoped, tag = 'scoped memory for classifier_forward.1']
    #allocation5 [shape = 'u8[4096]{0}', space=vmem, size = 0x1000, scoped, tag = 'output window, operand 0, single buffered']
    %10 = vsyncpa [#allocation3], 0
    %11 = vsyncpa [#allocation4], 0
    // Predicated region
    $region2: #{classifier_forward.1} parent=1 // pred_check
      _
    $region3: #{classifier_forward.1} parent=1 // pred_check_branch
      %13 = sbr.rel (0) target = $region5
    $region4: #{classifier_forward.1} parent=1 // pred_region
      _
    $region5: #{classifier_forward.1} parent=1 // pred_fallthru
      _
    // Predicated region
    $region6: #{classifier_forward.1} parent=1 // pred_check
      _
    $region7: #{classifier_forward.1} parent=1 // pred_check_branch
      %15 = sbr.rel (0) target = $region9
    $region8: #{classifier_forward.1} parent=1 // pred_region
      %s17 = ssub.s32 16384, 16384
      %18 = vsyncadd [#allocation3], %s17
      %s19 = sshll.u32 [#allocation2], 4
      %s20 = int_to_ptr.vmem [resolvable:$true] %s19
      %25 = dma.hbm_to_vmem [thread:$0]  %s1, 16384, %s20, [#allocation3], 256, 256, 16
    $region9: #{classifier_forward.1} parent=1 // pred_fallthru
      _
    // Predicated region
    $region10: #{classifier_forward.1} parent=1 // pred_check
      _
    $region11: #{classifier_forward.1} parent=1 // pred_check_branch
      %27 = sbr.rel (0) target = $region13
    $region12: #{classifier_forward.1} parent=1 // pred_region
      _
    $region13: #{classifier_forward.1} parent=1 // pred_fallthru
      _
    // Predicated region
    $region14: #{classifier_forward.1} parent=1 // pred_check
      _
    $region15: #{classifier_forward.1} parent=1 // pred_check_branch
      %29 = sbr.rel (0) target = $region17
    $region16: #{classifier_forward.1} parent=1 // pred_region
      _
    $region17: #{classifier_forward.1} parent=1 // pred_fallthru
      _
    // Predicated region
    $region18: #{classifier_forward.1} parent=1 // pred_check
      _
    $region19: #{classifier_forward.1} parent=1 // pred_check_branch
      %31 = sbr.rel (0) target = $region21
    $region20: #{classifier_forward.1} parent=1 // pred_region
      _
    $region21: #{classifier_forward.1} parent=1 // pred_fallthru
      _
    // Predicated region
    $region22: #{classifier_forward.1} parent=1 // pred_check
      _
    $region23: #{classifier_forward.1} parent=1 // pred_check_branch
      %33 = sbr.rel (0) target = $region25
    $region24: #{classifier_forward.1} parent=1 // pred_region
      %34 = dma.done [#allocation3], 16384
    $region25: #{classifier_forward.1} parent=1 // pred_fallthru
      _
    %v36 = vld [vmem:[%s0] sm:$0xff]
    %v37 = vld [vmem:[%s0 + $0x8] sm:$0xff]
    %v38 = vld [vmem:[%s0 + $0x10] sm:$0xff]
    %v39 = vld [vmem:[%s0 + $0x18] sm:$0xff]
    %v40 = vpack.c.bf16 %v36, %v36
    %v41 = vpack.c.bf16 %v37, %v37
    %v42 = vpack.c.bf16 %v38, %v38
    %v43 = vpack.c.bf16 %v39, %v39
    %v44 = vld [vmem:[#allocation2] sm:$0xff]
    %v45 = vld [vmem:[#allocation2 + $0x8] sm:$0xff]
    %v46 = vld [vmem:[#allocation2 + $0x10] sm:$0xff]
    %v47 = vld [vmem:[#allocation2 + $0x18] sm:$0xff]
    %v48 = vld [vmem:[#allocation2 + $0x20] sm:$0xff]
    %v49 = vld [vmem:[#allocation2 + $0x28] sm:$0xff]
    %v50 = vld [vmem:[#allocation2 + $0x30] sm:$0xff]
    %v51 = vld [vmem:[#allocation2 + $0x38] sm:$0xff]
    %v52 = vld [vmem:[#allocation2 + $0x40] sm:$0xff]
    %v53 = vld [vmem:[#allocation2 + $0x48] sm:$0xff]
    %v54 = vld [vmem:[#allocation2 + $0x50] sm:$0xff]
    %v55 = vld [vmem:[#allocation2 + $0x58] sm:$0xff]
    %v56 = vld [vmem:[#allocation2 + $0x60] sm:$0xff]
    %v57 = vld [vmem:[#allocation2 + $0x68] sm:$0xff]
    %v58 = vld [vmem:[#allocation2 + $0x70] sm:$0xff]
    %v59 = vld [vmem:[#allocation2 + $0x78] sm:$0xff]
    %v60 = vld [vmem:[#allocation2 + $0x80] sm:$0xff]
    %v61 = vld [vmem:[#allocation2 + $0x88] sm:$0xff]
    %v62 = vld [vmem:[#allocation2 + $0x90] sm:$0xff]
    %v63 = vld [vmem:[#allocation2 + $0x98] sm:$0xff]
    %v64 = vld [vmem:[#allocation2 + $0xa0] sm:$0xff]
    %v65 = vld [vmem:[#allocation2 + $0xa8] sm:$0xff]
    %v66 = vld [vmem:[#allocation2 + $0xb0] sm:$0xff]
    %v67 = vld [vmem:[#allocation2 + $0xb8] sm:$0xff]
    %v68 = vld [vmem:[#allocation2 + $0xc0] sm:$0xff]
    %v69 = vld [vmem:[#allocation2 + $0xc8] sm:$0xff]
    %v70 = vld [vmem:[#allocation2 + $0xd0] sm:$0xff]
    %v71 = vld [vmem:[#allocation2 + $0xd8] sm:$0xff]
    %v72 = vld [vmem:[#allocation2 + $0xe0] sm:$0xff]
    %v73 = vld [vmem:[#allocation2 + $0xe8] sm:$0xff]
    %v74 = vld [vmem:[#allocation2 + $0xf0] sm:$0xff]
    %v75 = vld [vmem:[#allocation2 + $0xf8] sm:$0xff]
    %v76 = vld [vmem:[#allocation2 + $0x100] sm:$0xff]
    %v77 = vld [vmem:[#allocation2 + $0x108] sm:$0xff]
    %v78 = vld [vmem:[#allocation2 + $0x110] sm:$0xff]
    %v79 = vld [vmem:[#allocation2 + $0x118] sm:$0xff]
    %v80 = vld [vmem:[#allocation2 + $0x120] sm:$0xff]
    %v81 = vld [vmem:[#allocation2 + $0x128] sm:$0xff]
    %v82 = vld [vmem:[#allocation2 + $0x130] sm:$0xff]
    %v83 = vld [vmem:[#allocation2 + $0x138] sm:$0xff]
    %v84 = vld [vmem:[#allocation2 + $0x140] sm:$0xff]
    %v85 = vld [vmem:[#allocation2 + $0x148] sm:$0xff]
    %v86 = vld [vmem:[#allocation2 + $0x150] sm:$0xff]
    %v87 = vld [vmem:[#allocation2 + $0x158] sm:$0xff]
    %v88 = vld [vmem:[#allocation2 + $0x160] sm:$0xff]
    %v89 = vld [vmem:[#allocation2 + $0x168] sm:$0xff]
    %v90 = vld [vmem:[#allocation2 + $0x170] sm:$0xff]
    %v91 = vld [vmem:[#allocation2 + $0x178] sm:$0xff]
    %v92 = vld [vmem:[#allocation2 + $0x180] sm:$0xff]
    %v93 = vld [vmem:[#allocation2 + $0x188] sm:$0xff]
    %v94 = vld [vmem:[#allocation2 + $0x190] sm:$0xff]
    %v95 = vld [vmem:[#allocation2 + $0x198] sm:$0xff]
    %v96 = vld [vmem:[#allocation2 + $0x1a0] sm:$0xff]
    %v97 = vld [vmem:[#allocation2 + $0x1a8] sm:$0xff]
    %v98 = vld [vmem:[#allocation2 + $0x1b0] sm:$0xff]
    %v99 = vld [vmem:[#allocation2 + $0x1b8] sm:$0xff]
    %v100 = vld [vmem:[#allocation2 + $0x1c0] sm:$0xff]
    %v101 = vld [vmem:[#allocation2 + $0x1c8] sm:$0xff]
    %v102 = vld [vmem:[#allocation2 + $0x1d0] sm:$0xff]
    %v103 = vld [vmem:[#allocation2 + $0x1d8] sm:$0xff]
    %v104 = vld [vmem:[#allocation2 + $0x1e0] sm:$0xff]
    %v105 = vld [vmem:[#allocation2 + $0x1e8] sm:$0xff]
    %v106 = vld [vmem:[#allocation2 + $0x1f0] sm:$0xff]
    %v107 = vld [vmem:[#allocation2 + $0x1f8] sm:$0xff]
    %v108 = vld [vmem:[#allocation2 + $0x200] sm:$0xff]
    %v109 = vld [vmem:[#allocation2 + $0x208] sm:$0xff]
    %v110 = vld [vmem:[#allocation2 + $0x210] sm:$0xff]
    %v111 = vld [vmem:[#allocation2 + $0x218] sm:$0xff]
    %v112 = vld [vmem:[#allocation2 + $0x220] sm:$0xff]
    %v113 = vld [vmem:[#allocation2 + $0x228] sm:$0xff]
    %v114 = vld [vmem:[#allocation2 + $0x230] sm:$0xff]
    %v115 = vld [vmem:[#allocation2 + $0x238] sm:$0xff]
    %v116 = vld [vmem:[#allocation2 + $0x240] sm:$0xff]
    %v117 = vld [vmem:[#allocation2 + $0x248] sm:$0xff]
    %v118 = vld [vmem:[#allocation2 + $0x250] sm:$0xff]
    %v119 = vld [vmem:[#allocation2 + $0x258] sm:$0xff]
    %v120 = vld [vmem:[#allocation2 + $0x260] sm:$0xff]
    %v121 = vld [vmem:[#allocation2 + $0x268] sm:$0xff]
    %v122 = vld [vmem:[#allocation2 + $0x270] sm:$0xff]
    %v123 = vld [vmem:[#allocation2 + $0x278] sm:$0xff]
    %v124 = vld [vmem:[#allocation2 + $0x280] sm:$0xff]
    %v125 = vld [vmem:[#allocation2 + $0x288] sm:$0xff]
    %v126 = vld [vmem:[#allocation2 + $0x290] sm:$0xff]
    %v127 = vld [vmem:[#allocation2 + $0x298] sm:$0xff]
    %v128 = vld [vmem:[#allocation2 + $0x2a0] sm:$0xff]
    %v129 = vld [vmem:[#allocation2 + $0x2a8] sm:$0xff]
    %v130 = vld [vmem:[#allocation2 + $0x2b0] sm:$0xff]
    %v131 = vld [vmem:[#allocation2 + $0x2b8] sm:$0xff]
    %v132 = vld [vmem:[#allocation2 + $0x2c0] sm:$0xff]
    %v133 = vld [vmem:[#allocation2 + $0x2c8] sm:$0xff]
    %v134 = vld [vmem:[#allocation2 + $0x2d0] sm:$0xff]
    %v135 = vld [vmem:[#allocation2 + $0x2d8] sm:$0xff]
    %v136 = vld [vmem:[#allocation2 + $0x2e0] sm:$0xff]
    %v137 = vld [vmem:[#allocation2 + $0x2e8] sm:$0xff]
    %v138 = vld [vmem:[#allocation2 + $0x2f0] sm:$0xff]
    %v139 = vld [vmem:[#allocation2 + $0x2f8] sm:$0xff]
    %v140 = vld [vmem:[#allocation2 + $0x300] sm:$0xff]
    %v141 = vld [vmem:[#allocation2 + $0x308] sm:$0xff]
    %v142 = vld [vmem:[#allocation2 + $0x310] sm:$0xff]
    %v143 = vld [vmem:[#allocation2 + $0x318] sm:$0xff]
    %v144 = vld [vmem:[#allocation2 + $0x320] sm:$0xff]
    %v145 = vld [vmem:[#allocation2 + $0x328] sm:$0xff]
    %v146 = vld [vmem:[#allocation2 + $0x330] sm:$0xff]
    %v147 = vld [vmem:[#allocation2 + $0x338] sm:$0xff]
    %v148 = vld [vmem:[#allocation2 + $0x340] sm:$0xff]
    %v149 = vld [vmem:[#allocation2 + $0x348] sm:$0xff]
    %v150 = vld [vmem:[#allocation2 + $0x350] sm:$0xff]
    %v151 = vld [vmem:[#allocation2 + $0x358] sm:$0xff]
    %v152 = vld [vmem:[#allocation2 + $0x360] sm:$0xff]
    %v153 = vld [vmem:[#allocation2 + $0x368] sm:$0xff]
    %v154 = vld [vmem:[#allocation2 + $0x370] sm:$0xff]
    %v155 = vld [vmem:[#allocation2 + $0x378] sm:$0xff]
    %v156 = vld [vmem:[#allocation2 + $0x380] sm:$0xff]
    %v157 = vld [vmem:[#allocation2 + $0x388] sm:$0xff]
    %v158 = vld [vmem:[#allocation2 + $0x390] sm:$0xff]
    %v159 = vld [vmem:[#allocation2 + $0x398] sm:$0xff]
    %v160 = vld [vmem:[#allocation2 + $0x3a0] sm:$0xff]
    %v161 = vld [vmem:[#allocation2 + $0x3a8] sm:$0xff]
    %v162 = vld [vmem:[#allocation2 + $0x3b0] sm:$0xff]
    %v163 = vld [vmem:[#allocation2 + $0x3b8] sm:$0xff]
    %v164 = vld [vmem:[#allocation2 + $0x3c0] sm:$0xff]
    %v165 = vld [vmem:[#allocation2 + $0x3c8] sm:$0xff]
    %v166 = vld [vmem:[#allocation2 + $0x3d0] sm:$0xff]
    %v167 = vld [vmem:[#allocation2 + $0x3d8] sm:$0xff]
    %v168 = vld [vmem:[#allocation2 + $0x3e0] sm:$0xff]
    %v169 = vld [vmem:[#allocation2 + $0x3e8] sm:$0xff]
    %v170 = vld [vmem:[#allocation2 + $0x3f0] sm:$0xff]
    %v171 = vld [vmem:[#allocation2 + $0x3f8] sm:$0xff]
    %v172 = vld [vmem:[%s2] sm:$0xf]
    %v174 = vlaneseq
    %v175 = vshrl.u32 %v174, 7
    %v176 = vsub.s32 0, %v175
    %v177 = vrot.slane %v172, %v176
    %v178 = vlaneseq
    %v179 = vshrl.u32 %v178, 7
    %v180 = vsub.s32 1, %v179
    %v181 = vrot.slane %v172, %v180
    %v182 = vlaneseq
    %v183 = vshrl.u32 %v182, 7
    %v184 = vsub.s32 2, %v183
    %v185 = vrot.slane %v172, %v184
    %v186 = vlaneseq
    %v187 = vshrl.u32 %v186, 7
    %v188 = vsub.s32 3, %v187
    %v189 = vrot.slane %v172, %v188
    %v322 = vunpack.c.l.b16 %v44
    %v323 = vunpack.c.h.b16 %v44
    %v324 = vunpack.c.l.b16 %v45
    %v325 = vunpack.c.h.b16 %v45
    %v326 = vunpack.c.l.b16 %v46
    %v327 = vunpack.c.h.b16 %v46
    %v328 = vunpack.c.l.b16 %v47
    %v329 = vunpack.c.h.b16 %v47
    %v330 = vunpack.c.l.b16 %v48
    %v331 = vunpack.c.h.b16 %v48
    %v332 = vunpack.c.l.b16 %v49
    %v333 = vunpack.c.h.b16 %v49
    %v334 = vunpack.c.l.b16 %v50
    %v335 = vunpack.c.h.b16 %v50
    %v336 = vunpack.c.l.b16 %v51
    %v337 = vunpack.c.h.b16 %v51
    %v338 = vunpack.c.l.b16 %v52
    %v339 = vunpack.c.h.b16 %v52
    %v340 = vunpack.c.l.b16 %v53
    %v341 = vunpack.c.h.b16 %v53
    %v342 = vunpack.c.l.b16 %v54
    %v343 = vunpack.c.h.b16 %v54
    %v344 = vunpack.c.l.b16 %v55
    %v345 = vunpack.c.h.b16 %v55
    %v346 = vunpack.c.l.b16 %v56
    %v347 = vunpack.c.h.b16 %v56
    %v348 = vunpack.c.l.b16 %v57
    %v349 = vunpack.c.h.b16 %v57
    %v350 = vunpack.c.l.b16 %v58
    %v351 = vunpack.c.h.b16 %v58
    %v352 = vunpack.c.l.b16 %v59
    %v353 = vunpack.c.h.b16 %v59
    %v354 = vunpack.c.l.b16 %v60
    %v355 = vunpack.c.h.b16 %v60
    %v356 = vunpack.c.l.b16 %v61
    %v357 = vunpack.c.h.b16 %v61
    %v358 = vunpack.c.l.b16 %v62
    %v359 = vunpack.c.h.b16 %v62
    %v360 = vunpack.c.l.b16 %v63
    %v361 = vunpack.c.h.b16 %v63
    %v362 = vunpack.c.l.b16 %v64
    %v363 = vunpack.c.h.b16 %v64
    %v364 = vunpack.c.l.b16 %v65
    %v365 = vunpack.c.h.b16 %v65
    %v366 = vunpack.c.l.b16 %v66
    %v367 = vunpack.c.h.b16 %v66
    %v368 = vunpack.c.l.b16 %v67
    %v369 = vunpack.c.h.b16 %v67
    %v370 = vunpack.c.l.b16 %v68
    %v371 = vunpack.c.h.b16 %v68
    %v372 = vunpack.c.l.b16 %v69
    %v373 = vunpack.c.h.b16 %v69
    %v374 = vunpack.c.l.b16 %v70
    %v375 = vunpack.c.h.b16 %v70
    %v376 = vunpack.c.l.b16 %v71
    %v377 = vunpack.c.h.b16 %v71
    %v378 = vunpack.c.l.b16 %v72
    %v379 = vunpack.c.h.b16 %v72
    %v380 = vunpack.c.l.b16 %v73
    %v381 = vunpack.c.h.b16 %v73
    %v382 = vunpack.c.l.b16 %v74
    %v383 = vunpack.c.h.b16 %v74
    %v384 = vunpack.c.l.b16 %v75
    %v385 = vunpack.c.h.b16 %v75
    %v386 = vunpack.c.l.b16 %v76
    %v387 = vunpack.c.h.b16 %v76
    %v388 = vunpack.c.l.b16 %v77
    %v389 = vunpack.c.h.b16 %v77
    %v390 = vunpack.c.l.b16 %v78
    %v391 = vunpack.c.h.b16 %v78
    %v392 = vunpack.c.l.b16 %v79
    %v393 = vunpack.c.h.b16 %v79
    %v394 = vunpack.c.l.b16 %v80
    %v395 = vunpack.c.h.b16 %v80
    %v396 = vunpack.c.l.b16 %v81
    %v397 = vunpack.c.h.b16 %v81
    %v398 = vunpack.c.l.b16 %v82
    %v399 = vunpack.c.h.b16 %v82
    %v400 = vunpack.c.l.b16 %v83
    %v401 = vunpack.c.h.b16 %v83
    %v402 = vunpack.c.l.b16 %v84
    %v403 = vunpack.c.h.b16 %v84
    %v404 = vunpack.c.l.b16 %v85
    %v405 = vunpack.c.h.b16 %v85
    %v406 = vunpack.c.l.b16 %v86
    %v407 = vunpack.c.h.b16 %v86
    %v408 = vunpack.c.l.b16 %v87
    %v409 = vunpack.c.h.b16 %v87
    %v410 = vunpack.c.l.b16 %v88
    %v411 = vunpack.c.h.b16 %v88
    %v412 = vunpack.c.l.b16 %v89
    %v413 = vunpack.c.h.b16 %v89
    %v414 = vunpack.c.l.b16 %v90
    %v415 = vunpack.c.h.b16 %v90
    %v416 = vunpack.c.l.b16 %v91
    %v417 = vunpack.c.h.b16 %v91
    %v418 = vunpack.c.l.b16 %v92
    %v419 = vunpack.c.h.b16 %v92
    %v420 = vunpack.c.l.b16 %v93
    %v421 = vunpack.c.h.b16 %v93
    %v422 = vunpack.c.l.b16 %v94
    %v423 = vunpack.c.h.b16 %v94
    %v424 = vunpack.c.l.b16 %v95
    %v425 = vunpack.c.h.b16 %v95
    %v426 = vunpack.c.l.b16 %v96
    %v427 = vunpack.c.h.b16 %v96
    %v428 = vunpack.c.l.b16 %v97
    %v429 = vunpack.c.h.b16 %v97
    %v430 = vunpack.c.l.b16 %v98
    %v431 = vunpack.c.h.b16 %v98
    %v432 = vunpack.c.l.b16 %v99
    %v433 = vunpack.c.h.b16 %v99
    %v434 = vunpack.c.l.b16 %v100
    %v435 = vunpack.c.h.b16 %v100
    %v436 = vunpack.c.l.b16 %v101
    %v437 = vunpack.c.h.b16 %v101
    %v438 = vunpack.c.l.b16 %v102
    %v439 = vunpack.c.h.b16 %v102
    %v440 = vunpack.c.l.b16 %v103
    %v441 = vunpack.c.h.b16 %v103
    %v442 = vunpack.c.l.b16 %v104
    %v443 = vunpack.c.h.b16 %v104
    %v444 = vunpack.c.l.b16 %v105
    %v445 = vunpack.c.h.b16 %v105
    %v446 = vunpack.c.l.b16 %v106
    %v447 = vunpack.c.h.b16 %v106
    %v448 = vunpack.c.l.b16 %v107
    %v449 = vunpack.c.h.b16 %v107
    %v450 = vunpack.c.l.b16 %v108
    %v451 = vunpack.c.h.b16 %v108
    %v452 = vunpack.c.l.b16 %v109
    %v453 = vunpack.c.h.b16 %v109
    %v454 = vunpack.c.l.b16 %v110
    %v455 = vunpack.c.h.b16 %v110
    %v456 = vunpack.c.l.b16 %v111
    %v457 = vunpack.c.h.b16 %v111
    %v458 = vunpack.c.l.b16 %v112
    %v459 = vunpack.c.h.b16 %v112
    %v460 = vunpack.c.l.b16 %v113
    %v461 = vunpack.c.h.b16 %v113
    %v462 = vunpack.c.l.b16 %v114
    %v463 = vunpack.c.h.b16 %v114
    %v464 = vunpack.c.l.b16 %v115
    %v465 = vunpack.c.h.b16 %v115
    %v466 = vunpack.c.l.b16 %v116
    %v467 = vunpack.c.h.b16 %v116
    %v468 = vunpack.c.l.b16 %v117
    %v469 = vunpack.c.h.b16 %v117
    %v470 = vunpack.c.l.b16 %v118
    %v471 = vunpack.c.h.b16 %v118
    %v472 = vunpack.c.l.b16 %v119
    %v473 = vunpack.c.h.b16 %v119
    %v474 = vunpack.c.l.b16 %v120
    %v475 = vunpack.c.h.b16 %v120
    %v476 = vunpack.c.l.b16 %v121
    %v477 = vunpack.c.h.b16 %v121
    %v478 = vunpack.c.l.b16 %v122
    %v479 = vunpack.c.h.b16 %v122
    %v480 = vunpack.c.l.b16 %v123
    %v481 = vunpack.c.h.b16 %v123
    %v482 = vunpack.c.l.b16 %v124
    %v483 = vunpack.c.h.b16 %v124
    %v484 = vunpack.c.l.b16 %v125
    %v485 = vunpack.c.h.b16 %v125
    %v486 = vunpack.c.l.b16 %v126
    %v487 = vunpack.c.h.b16 %v126
    %v488 = vunpack.c.l.b16 %v127
    %v489 = vunpack.c.h.b16 %v127
    %v490 = vunpack.c.l.b16 %v128
    %v491 = vunpack.c.h.b16 %v128
    %v492 = vunpack.c.l.b16 %v129
    %v493 = vunpack.c.h.b16 %v129
    %v494 = vunpack.c.l.b16 %v130
    %v495 = vunpack.c.h.b16 %v130
    %v496 = vunpack.c.l.b16 %v131
    %v497 = vunpack.c.h.b16 %v131
    %v498 = vunpack.c.l.b16 %v132
    %v499 = vunpack.c.h.b16 %v132
    %v500 = vunpack.c.l.b16 %v133
    %v501 = vunpack.c.h.b16 %v133
    %v502 = vunpack.c.l.b16 %v134
    %v503 = vunpack.c.h.b16 %v134
    %v504 = vunpack.c.l.b16 %v135
    %v505 = vunpack.c.h.b16 %v135
    %v506 = vunpack.c.l.b16 %v136
    %v507 = vunpack.c.h.b16 %v136
    %v508 = vunpack.c.l.b16 %v137
    %v509 = vunpack.c.h.b16 %v137
    %v510 = vunpack.c.l.b16 %v138
    %v511 = vunpack.c.h.b16 %v138
    %v512 = vunpack.c.l.b16 %v139
    %v513 = vunpack.c.h.b16 %v139
    %v514 = vunpack.c.l.b16 %v140
    %v515 = vunpack.c.h.b16 %v140
    %v516 = vunpack.c.l.b16 %v141
    %v517 = vunpack.c.h.b16 %v141
    %v518 = vunpack.c.l.b16 %v142
    %v519 = vunpack.c.h.b16 %v142
    %v520 = vunpack.c.l.b16 %v143
    %v521 = vunpack.c.h.b16 %v143
    %v522 = vunpack.c.l.b16 %v144
    %v523 = vunpack.c.h.b16 %v144
    %v524 = vunpack.c.l.b16 %v145
    %v525 = vunpack.c.h.b16 %v145
    %v526 = vunpack.c.l.b16 %v146
    %v527 = vunpack.c.h.b16 %v146
    %v528 = vunpack.c.l.b16 %v147
    %v529 = vunpack.c.h.b16 %v147
    %v530 = vunpack.c.l.b16 %v148
    %v531 = vunpack.c.h.b16 %v148
    %v532 = vunpack.c.l.b16 %v149
    %v533 = vunpack.c.h.b16 %v149
    %v534 = vunpack.c.l.b16 %v150
    %v535 = vunpack.c.h.b16 %v150
    %v536 = vunpack.c.l.b16 %v151
    %v537 = vunpack.c.h.b16 %v151
    %v538 = vunpack.c.l.b16 %v152
    %v539 = vunpack.c.h.b16 %v152
    %v540 = vunpack.c.l.b16 %v153
    %v541 = vunpack.c.h.b16 %v153
    %v542 = vunpack.c.l.b16 %v154
    %v543 = vunpack.c.h.b16 %v154
    %v544 = vunpack.c.l.b16 %v155
    %v545 = vunpack.c.h.b16 %v155
    %v546 = vunpack.c.l.b16 %v156
    %v547 = vunpack.c.h.b16 %v156
    %v548 = vunpack.c.l.b16 %v157
    %v549 = vunpack.c.h.b16 %v157
    %v550 = vunpack.c.l.b16 %v158
    %v551 = vunpack.c.h.b16 %v158
    %v552 = vunpack.c.l.b16 %v159
    %v553 = vunpack.c.h.b16 %v159
    %v554 = vunpack.c.l.b16 %v160
    %v555 = vunpack.c.h.b16 %v160
    %v556 = vunpack.c.l.b16 %v161
    %v557 = vunpack.c.h.b16 %v161
    %v558 = vunpack.c.l.b16 %v162
    %v559 = vunpack.c.h.b16 %v162
    %v560 = vunpack.c.l.b16 %v163
    %v561 = vunpack.c.h.b16 %v163
    %v562 = vunpack.c.l.b16 %v164
    %v563 = vunpack.c.h.b16 %v164
    %v564 = vunpack.c.l.b16 %v165
    %v565 = vunpack.c.h.b16 %v165
    %v566 = vunpack.c.l.b16 %v166
    %v567 = vunpack.c.h.b16 %v166
    %v568 = vunpack.c.l.b16 %v167
    %v569 = vunpack.c.h.b16 %v167
    %v570 = vunpack.c.l.b16 %v168
    %v571 = vunpack.c.h.b16 %v168
    %v572 = vunpack.c.l.b16 %v169
    %v573 = vunpack.c.h.b16 %v169
    %v574 = vunpack.c.l.b16 %v170
    %v575 = vunpack.c.h.b16 %v170
    %v576 = vunpack.c.l.b16 %v171
    %v577 = vunpack.c.h.b16 %v171
    %v578 = vpack.c.b16 %v326, %v322
    %v579 = vpack.c.b16 %v327, %v323
    %v580 = vpack.c.b16 %v328, %v324
    %v581 = vpack.c.b16 %v329, %v325
    %v582 = vpack.c.b16 %v334, %v330
    %v583 = vpack.c.b16 %v335, %v331
    %v584 = vpack.c.b16 %v336, %v332
    %v585 = vpack.c.b16 %v337, %v333
    %v586 = vpack.c.b16 %v342, %v338
    %v587 = vpack.c.b16 %v343, %v339
    %v588 = vpack.c.b16 %v344, %v340
    %v589 = vpack.c.b16 %v345, %v341
    %v590 = vpack.c.b16 %v350, %v346
    %v591 = vpack.c.b16 %v351, %v347
    %v592 = vpack.c.b16 %v352, %v348
    %v593 = vpack.c.b16 %v353, %v349
    %v594 = vpack.c.b16 %v358, %v354
    %v595 = vpack.c.b16 %v359, %v355
    %v596 = vpack.c.b16 %v360, %v356
    %v597 = vpack.c.b16 %v361, %v357
    %v598 = vpack.c.b16 %v366, %v362
    %v599 = vpack.c.b16 %v367, %v363
    %v600 = vpack.c.b16 %v368, %v364
    %v601 = vpack.c.b16 %v369, %v365
    %v602 = vpack.c.b16 %v374, %v370
    %v603 = vpack.c.b16 %v375, %v371
    %v604 = vpack.c.b16 %v376, %v372
    %v605 = vpack.c.b16 %v377, %v373
    %v606 = vpack.c.b16 %v382, %v378
    %v607 = vpack.c.b16 %v383, %v379
    %v608 = vpack.c.b16 %v384, %v380
    %v609 = vpack.c.b16 %v385, %v381
    %v610 = vpack.c.b16 %v390, %v386
    %v611 = vpack.c.b16 %v391, %v387
    %v612 = vpack.c.b16 %v392, %v388
    %v613 = vpack.c.b16 %v393, %v389
    %v614 = vpack.c.b16 %v398, %v394
    %v615 = vpack.c.b16 %v399, %v395
    %v616 = vpack.c.b16 %v400, %v396
    %v617 = vpack.c.b16 %v401, %v397
    %v618 = vpack.c.b16 %v406, %v402
    %v619 = vpack.c.b16 %v407, %v403
    %v620 = vpack.c.b16 %v408, %v404
    %v621 = vpack.c.b16 %v409, %v405
    %v622 = vpack.c.b16 %v414, %v410
    %v623 = vpack.c.b16 %v415, %v411
    %v624 = vpack.c.b16 %v416, %v412
    %v625 = vpack.c.b16 %v417, %v413
    %v626 = vpack.c.b16 %v422, %v418
    %v627 = vpack.c.b16 %v423, %v419
    %v628 = vpack.c.b16 %v424, %v420
    %v629 = vpack.c.b16 %v425, %v421
    %v630 = vpack.c.b16 %v430, %v426
    %v631 = vpack.c.b16 %v431, %v427
    %v632 = vpack.c.b16 %v432, %v428
    %v633 = vpack.c.b16 %v433, %v429
    %v634 = vpack.c.b16 %v438, %v434
    %v635 = vpack.c.b16 %v439, %v435
    %v636 = vpack.c.b16 %v440, %v436
    %v637 = vpack.c.b16 %v441, %v437
    %v638 = vpack.c.b16 %v446, %v442
    %v639 = vpack.c.b16 %v447, %v443
    %v640 = vpack.c.b16 %v448, %v444
    %v641 = vpack.c.b16 %v449, %v445
    %v642 = vpack.c.b16 %v454, %v450
    %v643 = vpack.c.b16 %v455, %v451
    %v644 = vpack.c.b16 %v456, %v452
    %v645 = vpack.c.b16 %v457, %v453
    %v646 = vpack.c.b16 %v462, %v458
    %v647 = vpack.c.b16 %v463, %v459
    %v648 = vpack.c.b16 %v464, %v460
    %v649 = vpack.c.b16 %v465, %v461
    %v650 = vpack.c.b16 %v470, %v466
    %v651 = vpack.c.b16 %v471, %v467
    %v652 = vpack.c.b16 %v472, %v468
    %v653 = vpack.c.b16 %v473, %v469
    %v654 = vpack.c.b16 %v478, %v474
    %v655 = vpack.c.b16 %v479, %v475
    %v656 = vpack.c.b16 %v480, %v476
    %v657 = vpack.c.b16 %v481, %v477
    %v658 = vpack.c.b16 %v486, %v482
    %v659 = vpack.c.b16 %v487, %v483
    %v660 = vpack.c.b16 %v488, %v484
    %v661 = vpack.c.b16 %v489, %v485
    %v662 = vpack.c.b16 %v494, %v490
    %v663 = vpack.c.b16 %v495, %v491
    %v664 = vpack.c.b16 %v496, %v492
    %v665 = vpack.c.b16 %v497, %v493
    %v666 = vpack.c.b16 %v502, %v498
    %v667 = vpack.c.b16 %v503, %v499
    %v668 = vpack.c.b16 %v504, %v500
    %v669 = vpack.c.b16 %v505, %v501
    %v670 = vpack.c.b16 %v510, %v506
    %v671 = vpack.c.b16 %v511, %v507
    %v672 = vpack.c.b16 %v512, %v508
    %v673 = vpack.c.b16 %v513, %v509
    %v674 = vpack.c.b16 %v518, %v514
    %v675 = vpack.c.b16 %v519, %v515
    %v676 = vpack.c.b16 %v520, %v516
    %v677 = vpack.c.b16 %v521, %v517
    %v678 = vpack.c.b16 %v526, %v522
    %v679 = vpack.c.b16 %v527, %v523
    %v680 = vpack.c.b16 %v528, %v524
    %v681 = vpack.c.b16 %v529, %v525
    %v682 = vpack.c.b16 %v534, %v530
    %v683 = vpack.c.b16 %v535, %v531
    %v684 = vpack.c.b16 %v536, %v532
    %v685 = vpack.c.b16 %v537, %v533
    %v686 = vpack.c.b16 %v542, %v538
    %v687 = vpack.c.b16 %v543, %v539
    %v688 = vpack.c.b16 %v544, %v540
    %v689 = vpack.c.b16 %v545, %v541
    %v690 = vpack.c.b16 %v550, %v546
    %v691 = vpack.c.b16 %v551, %v547
    %v692 = vpack.c.b16 %v552, %v548
    %v693 = vpack.c.b16 %v553, %v549
    %v694 = vpack.c.b16 %v558, %v554
    %v695 = vpack.c.b16 %v559, %v555
    %v696 = vpack.c.b16 %v560, %v556
    %v697 = vpack.c.b16 %v561, %v557
    %v698 = vpack.c.b16 %v566, %v562
    %v699 = vpack.c.b16 %v567, %v563
    %v700 = vpack.c.b16 %v568, %v564
    %v701 = vpack.c.b16 %v569, %v565
    %v702 = vpack.c.b16 %v574, %v570
    %v703 = vpack.c.b16 %v575, %v571
    %v704 = vpack.c.b16 %v576, %v572
    %v705 = vpack.c.b16 %v577, %v573
    %834 = vmatprep.subr.bf16.mxu0 %v579
    %835 = vmatpush1.bf16.msra.mxu0 %v578
    %836 = vmatprep.subr.bf16.mxu0 %v583
    %837 = vmatpush1.bf16.msra.mxu0 %v582
    %838 = vmatprep.subr.bf16.mxu0 %v587
    %839 = vmatpush1.bf16.msra.mxu0 %v586
    %840 = vmatprep.subr.bf16.mxu0 %v591
    %841 = vmatpush1.bf16.msra.mxu0 %v590
    %842 = vmatprep.subr.bf16.mxu0 %v595
    %843 = vmatpush1.bf16.msra.mxu0 %v594
    %844 = vmatprep.subr.bf16.mxu0 %v599
    %845 = vmatpush1.bf16.msra.mxu0 %v598
    %846 = vmatprep.subr.bf16.mxu0 %v603
    %847 = vmatpush1.bf16.msra.mxu0 %v602
    %848 = vmatprep.subr.bf16.mxu0 %v607
    %849 = vmatpush1.bf16.msra.mxu0 %v606
    %850 = vmatprep.subr.bf16.mxu0 %v611
    %851 = vmatpush1.bf16.msra.mxu0 %v610
    %852 = vmatprep.subr.bf16.mxu0 %v615
    %853 = vmatpush1.bf16.msra.mxu0 %v614
    %854 = vmatprep.subr.bf16.mxu0 %v619
    %855 = vmatpush1.bf16.msra.mxu0 %v618
    %856 = vmatprep.subr.bf16.mxu0 %v623
    %857 = vmatpush1.bf16.msra.mxu0 %v622
    %858 = vmatprep.subr.bf16.mxu0 %v627
    %859 = vmatpush1.bf16.msra.mxu0 %v626
    %860 = vmatprep.subr.bf16.mxu0 %v631
    %861 = vmatpush1.bf16.msra.mxu0 %v630
    %862 = vmatprep.subr.bf16.mxu0 %v635
    %863 = vmatpush1.bf16.msra.mxu0 %v634
    %864 = vmatprep.subr.bf16.mxu0 %v639
    %865 = vmatpush1.bf16.msra.mxu0 %v638
    %866 = vmatprep.mubr.bf16.mxu0 %v41
    %867 = vmatmul.mubr.bf16.gmra.mrb[0].mxu0 %v40
    %v868 = vpop.f32.mrb[0].mxu0
    %v869 = vadd.f32 %v177, %v868
    %v870 = vpop.f32.mrb[0].mxu0
    %v871 = vadd.f32 %v181, %v870
    %v872 = vpop.f32.mrb[0].mxu0
    %v873 = vpop.f32.mrb[0].mxu0
    %874 = vdwg.mxu0
    %875 = vmatprep.subr.bf16.mxu0 %v643
    %876 = vmatpush1.bf16.msra.mxu0 %v642
    %877 = vmatprep.subr.bf16.mxu0 %v647
    %878 = vmatpush1.bf16.msra.mxu0 %v646
    %879 = vmatprep.subr.bf16.mxu0 %v651
    %880 = vmatpush1.bf16.msra.mxu0 %v650
    %881 = vmatprep.subr.bf16.mxu0 %v655
    %882 = vmatpush1.bf16.msra.mxu0 %v654
    %883 = vmatprep.subr.bf16.mxu0 %v659
    %884 = vmatpush1.bf16.msra.mxu0 %v658
    %885 = vmatprep.subr.bf16.mxu0 %v663
    %886 = vmatpush1.bf16.msra.mxu0 %v662
    %887 = vmatprep.subr.bf16.mxu0 %v667
    %888 = vmatpush1.bf16.msra.mxu0 %v666
    %889 = vmatprep.subr.bf16.mxu0 %v671
    %890 = vmatpush1.bf16.msra.mxu0 %v670
    %891 = vmatprep.subr.bf16.mxu0 %v675
    %892 = vmatpush1.bf16.msra.mxu0 %v674
    %893 = vmatprep.subr.bf16.mxu0 %v679
    %894 = vmatpush1.bf16.msra.mxu0 %v678
    %895 = vmatprep.subr.bf16.mxu0 %v683
    %896 = vmatpush1.bf16.msra.mxu0 %v682
    %897 = vmatprep.subr.bf16.mxu0 %v687
    %898 = vmatpush1.bf16.msra.mxu0 %v686
    %899 = vmatprep.subr.bf16.mxu0 %v691
    %900 = vmatpush1.bf16.msra.mxu0 %v690
    %901 = vmatprep.subr.bf16.mxu0 %v695
    %902 = vmatpush1.bf16.msra.mxu0 %v694
    %903 = vmatprep.subr.bf16.mxu0 %v699
    %904 = vmatpush1.bf16.msra.mxu0 %v698
    %905 = vmatprep.subr.bf16.mxu0 %v703
    %906 = vmatpush1.bf16.msra.mxu0 %v702
    %907 = vmatprep.mubr.bf16.mxu0 %v43
    %908 = vmatmul.mubr.bf16.gmra.mrb[0].mxu0 %v42
    %v909 = vpop.f32.mrb[0].mxu0
    %v910 = vadd.f32 %v869, %v909
    %v911 = vpop.f32.mrb[0].mxu0
    %v912 = vadd.f32 %v871, %v911
    %v913 = vpop.f32.mrb[0].mxu0
    %v914 = vpop.f32.mrb[0].mxu0
    %915 = vdwg.mxu0
    %916 = vmatprep.subr.bf16.mxu0 %v581
    %917 = vmatpush1.bf16.msra.mxu0 %v580
    %918 = vmatprep.subr.bf16.mxu0 %v585
    %919 = vmatpush1.bf16.msra.mxu0 %v584
    %920 = vmatprep.subr.bf16.mxu0 %v589
    %921 = vmatpush1.bf16.msra.mxu0 %v588
    %922 = vmatprep.subr.bf16.mxu0 %v593
    %923 = vmatpush1.bf16.msra.mxu0 %v592
    %924 = vmatprep.subr.bf16.mxu0 %v597
    %925 = vmatpush1.bf16.msra.mxu0 %v596
    %926 = vmatprep.subr.bf16.mxu0 %v601
    %927 = vmatpush1.bf16.msra.mxu0 %v600
    %928 = vmatprep.subr.bf16.mxu0 %v605
    %929 = vmatpush1.bf16.msra.mxu0 %v604
    %930 = vmatprep.subr.bf16.mxu0 %v609
    %931 = vmatpush1.bf16.msra.mxu0 %v608
    %932 = vmatprep.subr.bf16.mxu0 %v613
    %933 = vmatpush1.bf16.msra.mxu0 %v612
    %934 = vmatprep.subr.bf16.mxu0 %v617
    %935 = vmatpush1.bf16.msra.mxu0 %v616
    %936 = vmatprep.subr.bf16.mxu0 %v621
    %937 = vmatpush1.bf16.msra.mxu0 %v620
    %938 = vmatprep.subr.bf16.mxu0 %v625
    %939 = vmatpush1.bf16.msra.mxu0 %v624
    %940 = vmatprep.subr.bf16.mxu0 %v629
    %941 = vmatpush1.bf16.msra.mxu0 %v628
    %942 = vmatprep.subr.bf16.mxu0 %v633
    %943 = vmatpush1.bf16.msra.mxu0 %v632
    %944 = vmatprep.subr.bf16.mxu0 %v637
    %945 = vmatpush1.bf16.msra.mxu0 %v636
    %946 = vmatprep.subr.bf16.mxu0 %v641
    %947 = vmatpush1.bf16.msra.mxu0 %v640
    %948 = vmatprep.mubr.bf16.mxu0 %v41
    %949 = vmatmul.mubr.bf16.gmra.mrb[0].mxu0 %v40
    %v950 = vpop.f32.mrb[0].mxu0
    %v951 = vadd.f32 %v185, %v950
    %v952 = vpop.f32.mrb[0].mxu0
    %v953 = vadd.f32 %v189, %v952
    %v954 = vpop.f32.mrb[0].mxu0
    %v955 = vpop.f32.mrb[0].mxu0
    %956 = vdwg.mxu0
    %957 = vmatprep.subr.bf16.mxu0 %v645
    %958 = vmatpush1.bf16.msra.mxu0 %v644
    %959 = vmatprep.subr.bf16.mxu0 %v649
    %960 = vmatpush1.bf16.msra.mxu0 %v648
    %961 = vmatprep.subr.bf16.mxu0 %v653
    %962 = vmatpush1.bf16.msra.mxu0 %v652
    %963 = vmatprep.subr.bf16.mxu0 %v657
    %964 = vmatpush1.bf16.msra.mxu0 %v656
    %965 = vmatprep.subr.bf16.mxu0 %v661
    %966 = vmatpush1.bf16.msra.mxu0 %v660
    %967 = vmatprep.subr.bf16.mxu0 %v665
    %968 = vmatpush1.bf16.msra.mxu0 %v664
    %969 = vmatprep.subr.bf16.mxu0 %v669
    %970 = vmatpush1.bf16.msra.mxu0 %v668
    %971 = vmatprep.subr.bf16.mxu0 %v673
    %972 = vmatpush1.bf16.msra.mxu0 %v672
    %973 = vmatprep.subr.bf16.mxu0 %v677
    %974 = vmatpush1.bf16.msra.mxu0 %v676
    %975 = vmatprep.subr.bf16.mxu0 %v681
    %976 = vmatpush1.bf16.msra.mxu0 %v680
    %977 = vmatprep.subr.bf16.mxu0 %v685
    %978 = vmatpush1.bf16.msra.mxu0 %v684
    %979 = vmatprep.subr.bf16.mxu0 %v689
    %980 = vmatpush1.bf16.msra.mxu0 %v688
    %981 = vmatprep.subr.bf16.mxu0 %v693
    %982 = vmatpush1.bf16.msra.mxu0 %v692
    %983 = vmatprep.subr.bf16.mxu0 %v697
    %984 = vmatpush1.bf16.msra.mxu0 %v696
    %985 = vmatprep.subr.bf16.mxu0 %v701
    %986 = vmatpush1.bf16.msra.mxu0 %v700
    %987 = vmatprep.subr.bf16.mxu0 %v705
    %988 = vmatpush1.bf16.msra.mxu0 %v704
    %989 = vmatprep.mubr.bf16.mxu0 %v43
    %990 = vmatmul.mubr.bf16.gmra.mrb[0].mxu0 %v42
    %v991 = vpop.f32.mrb[0].mxu0
    %v992 = vadd.f32 %v951, %v991
    %v993 = vpop.f32.mrb[0].mxu0
    %v994 = vadd.f32 %v953, %v993
    %v995 = vpop.f32.mrb[0].mxu0
    %v996 = vpop.f32.mrb[0].mxu0
    %997 = vdwg.mxu0
    %v998 = vmax.f32 %v910, 0.0
    %v999 = vmax.f32 %v912, 0.0
    %v1000 = vmax.f32 %v992, 0.0
    %v1001 = vmax.f32 %v994, 0.0
    %v1002 = vpack.c.bf16 %v998, %v998
    %v1003 = vpack.c.bf16 %v999, %v999
    %v1004 = vpack.c.bf16 %v1000, %v1000
    %v1005 = vpack.c.bf16 %v1001, %v1001
    %v1006 = vld [vmem:[%s3] sm:$0xf]
    %v1007 = vld [vmem:[%s3 + $0x4] sm:$0xf]
    %v1008 = vld [vmem:[%s3 + $0x8] sm:$0xf]
    %v1009 = vld [vmem:[%s3 + $0xc] sm:$0xf]
    %v1010 = vld [vmem:[%s3 + $0x10] sm:$0xf]
    %v1011 = vld [vmem:[%s3 + $0x14] sm:$0xf]
    %v1012 = vld [vmem:[%s3 + $0x18] sm:$0xf]
    %v1013 = vld [vmem:[%s3 + $0x1c] sm:$0xf]
    %v1014 = vld [vmem:[%s3 + $0x20] sm:$0xf]
    %v1015 = vld [vmem:[%s3 + $0x24] sm:$0xf]
    %v1016 = vld [vmem:[%s3 + $0x28] sm:$0xf]
    %v1017 = vld [vmem:[%s3 + $0x2c] sm:$0xf]
    %v1018 = vld [vmem:[%s3 + $0x30] sm:$0xf]
    %v1019 = vld [vmem:[%s3 + $0x34] sm:$0xf]
    %v1020 = vld [vmem:[%s3 + $0x38] sm:$0xf]
    %v1021 = vld [vmem:[%s3 + $0x3c] sm:$0xf]
    %v1022 = vld [vmem:[%s3 + $0x40] sm:$0xf]
    %v1023 = vld [vmem:[%s3 + $0x44] sm:$0xf]
    %v1024 = vld [vmem:[%s3 + $0x48] sm:$0xf]
    %v1025 = vld [vmem:[%s3 + $0x4c] sm:$0xf]
    %v1026 = vld [vmem:[%s3 + $0x50] sm:$0xf]
    %v1027 = vld [vmem:[%s3 + $0x54] sm:$0xf]
    %v1028 = vld [vmem:[%s3 + $0x58] sm:$0xf]
    %v1029 = vld [vmem:[%s3 + $0x5c] sm:$0xf]
    %v1030 = vld [vmem:[%s3 + $0x60] sm:$0xf]
    %v1031 = vld [vmem:[%s3 + $0x64] sm:$0xf]
    %v1032 = vld [vmem:[%s3 + $0x68] sm:$0xf]
    %v1033 = vld [vmem:[%s3 + $0x6c] sm:$0xf]
    %v1034 = vld [vmem:[%s3 + $0x70] sm:$0xf]
    %v1035 = vld [vmem:[%s3 + $0x74] sm:$0xf]
    %v1036 = vld [vmem:[%s3 + $0x78] sm:$0xf]
    %v1037 = vld [vmem:[%s3 + $0x7c] sm:$0xf]
    %v1038 = vld [vmem:[%s3 + $0x80] sm:$0xf]
    %v1039 = vld [vmem:[%s3 + $0x84] sm:$0xf]
    %v1040 = vld [vmem:[%s3 + $0x88] sm:$0xf]
    %v1041 = vld [vmem:[%s3 + $0x8c] sm:$0xf]
    %v1042 = vld [vmem:[%s3 + $0x90] sm:$0xf]
    %v1043 = vld [vmem:[%s3 + $0x94] sm:$0xf]
    %v1044 = vld [vmem:[%s3 + $0x98] sm:$0xf]
    %v1045 = vld [vmem:[%s3 + $0x9c] sm:$0xf]
    %v1046 = vld [vmem:[%s3 + $0xa0] sm:$0xf]
    %v1047 = vld [vmem:[%s3 + $0xa4] sm:$0xf]
    %v1048 = vld [vmem:[%s3 + $0xa8] sm:$0xf]
    %v1049 = vld [vmem:[%s3 + $0xac] sm:$0xf]
    %v1050 = vld [vmem:[%s3 + $0xb0] sm:$0xf]
    %v1051 = vld [vmem:[%s3 + $0xb4] sm:$0xf]
    %v1052 = vld [vmem:[%s3 + $0xb8] sm:$0xf]
    %v1053 = vld [vmem:[%s3 + $0xbc] sm:$0xf]
    %v1054 = vld [vmem:[%s3 + $0xc0] sm:$0xf]
    %v1055 = vld [vmem:[%s3 + $0xc4] sm:$0xf]
    %v1056 = vld [vmem:[%s3 + $0xc8] sm:$0xf]
    %v1057 = vld [vmem:[%s3 + $0xcc] sm:$0xf]
    %v1058 = vld [vmem:[%s3 + $0xd0] sm:$0xf]
    %v1059 = vld [vmem:[%s3 + $0xd4] sm:$0xf]
    %v1060 = vld [vmem:[%s3 + $0xd8] sm:$0xf]
    %v1061 = vld [vmem:[%s3 + $0xdc] sm:$0xf]
    %v1062 = vld [vmem:[%s3 + $0xe0] sm:$0xf]
    %v1063 = vld [vmem:[%s3 + $0xe4] sm:$0xf]
    %v1064 = vld [vmem:[%s3 + $0xe8] sm:$0xf]
    %v1065 = vld [vmem:[%s3 + $0xec] sm:$0xf]
    %v1066 = vld [vmem:[%s3 + $0xf0] sm:$0xf]
    %v1067 = vld [vmem:[%s3 + $0xf4] sm:$0xf]
    %v1068 = vld [vmem:[%s3 + $0xf8] sm:$0xf]
    %v1069 = vld [vmem:[%s3 + $0xfc] sm:$0xf]
    %v1070 = vld [vmem:[%s4] sm:$0x1]
    %v1072 = vlaneseq
    %v1073 = vshrl.u32 %v1072, 7
    %v1074 = vsub.s32 0, %v1073
    %v1075 = vrot.slane %v1070, %v1074
    %v1141 = vunpack.c.l.b16 %v1006
    %v1142 = vunpack.c.l.b16 %v1007
    %v1143 = vunpack.c.l.b16 %v1008
    %v1144 = vunpack.c.l.b16 %v1009
    %v1145 = vunpack.c.l.b16 %v1010
    %v1146 = vunpack.c.l.b16 %v1011
    %v1147 = vunpack.c.l.b16 %v1012
    %v1148 = vunpack.c.l.b16 %v1013
    %v1149 = vunpack.c.l.b16 %v1014
    %v1150 = vunpack.c.l.b16 %v1015
    %v1151 = vunpack.c.l.b16 %v1016
    %v1152 = vunpack.c.l.b16 %v1017
    %v1153 = vunpack.c.l.b16 %v1018
    %v1154 = vunpack.c.l.b16 %v1019
    %v1155 = vunpack.c.l.b16 %v1020
    %v1156 = vunpack.c.l.b16 %v1021
    %v1157 = vunpack.c.l.b16 %v1022
    %v1158 = vunpack.c.l.b16 %v1023
    %v1159 = vunpack.c.l.b16 %v1024
    %v1160 = vunpack.c.l.b16 %v1025
    %v1161 = vunpack.c.l.b16 %v1026
    %v1162 = vunpack.c.l.b16 %v1027
    %v1163 = vunpack.c.l.b16 %v1028
    %v1164 = vunpack.c.l.b16 %v1029
    %v1165 = vunpack.c.l.b16 %v1030
    %v1166 = vunpack.c.l.b16 %v1031
    %v1167 = vunpack.c.l.b16 %v1032
    %v1168 = vunpack.c.l.b16 %v1033
    %v1169 = vunpack.c.l.b16 %v1034
    %v1170 = vunpack.c.l.b16 %v1035
    %v1171 = vunpack.c.l.b16 %v1036
    %v1172 = vunpack.c.l.b16 %v1037
    %v1173 = vunpack.c.l.b16 %v1038
    %v1174 = vunpack.c.l.b16 %v1039
    %v1175 = vunpack.c.l.b16 %v1040
    %v1176 = vunpack.c.l.b16 %v1041
    %v1177 = vunpack.c.l.b16 %v1042
    %v1178 = vunpack.c.l.b16 %v1043
    %v1179 = vunpack.c.l.b16 %v1044
    %v1180 = vunpack.c.l.b16 %v1045
    %v1181 = vunpack.c.l.b16 %v1046
    %v1182 = vunpack.c.l.b16 %v1047
    %v1183 = vunpack.c.l.b16 %v1048
    %v1184 = vunpack.c.l.b16 %v1049
    %v1185 = vunpack.c.l.b16 %v1050
    %v1186 = vunpack.c.l.b16 %v1051
    %v1187 = vunpack.c.l.b16 %v1052
    %v1188 = vunpack.c.l.b16 %v1053
    %v1189 = vunpack.c.l.b16 %v1054
    %v1190 = vunpack.c.l.b16 %v1055
    %v1191 = vunpack.c.l.b16 %v1056
    %v1192 = vunpack.c.l.b16 %v1057
    %v1193 = vunpack.c.l.b16 %v1058
    %v1194 = vunpack.c.l.b16 %v1059
    %v1195 = vunpack.c.l.b16 %v1060
    %v1196 = vunpack.c.l.b16 %v1061
    %v1197 = vunpack.c.l.b16 %v1062
    %v1198 = vunpack.c.l.b16 %v1063
    %v1199 = vunpack.c.l.b16 %v1064
    %v1200 = vunpack.c.l.b16 %v1065
    %v1201 = vunpack.c.l.b16 %v1066
    %v1202 = vunpack.c.l.b16 %v1067
    %v1203 = vunpack.c.l.b16 %v1068
    %v1204 = vunpack.c.l.b16 %v1069
    %v1205 = vpack.c.b16 %v1142, %v1141
    %v1206 = vpack.c.b16 %v1144, %v1143
    %v1207 = vpack.c.b16 %v1146, %v1145
    %v1208 = vpack.c.b16 %v1148, %v1147
    %v1209 = vpack.c.b16 %v1150, %v1149
    %v1210 = vpack.c.b16 %v1152, %v1151
    %v1211 = vpack.c.b16 %v1154, %v1153
    %v1212 = vpack.c.b16 %v1156, %v1155
    %v1213 = vpack.c.b16 %v1158, %v1157
    %v1214 = vpack.c.b16 %v1160, %v1159
    %v1215 = vpack.c.b16 %v1162, %v1161
    %v1216 = vpack.c.b16 %v1164, %v1163
    %v1217 = vpack.c.b16 %v1166, %v1165
    %v1218 = vpack.c.b16 %v1168, %v1167
    %v1219 = vpack.c.b16 %v1170, %v1169
    %v1220 = vpack.c.b16 %v1172, %v1171
    %v1221 = vpack.c.b16 %v1174, %v1173
    %v1222 = vpack.c.b16 %v1176, %v1175
    %v1223 = vpack.c.b16 %v1178, %v1177
    %v1224 = vpack.c.b16 %v1180, %v1179
    %v1225 = vpack.c.b16 %v1182, %v1181
    %v1226 = vpack.c.b16 %v1184, %v1183
    %v1227 = vpack.c.b16 %v1186, %v1185
    %v1228 = vpack.c.b16 %v1188, %v1187
    %v1229 = vpack.c.b16 %v1190, %v1189
    %v1230 = vpack.c.b16 %v1192, %v1191
    %v1231 = vpack.c.b16 %v1194, %v1193
    %v1232 = vpack.c.b16 %v1196, %v1195
    %v1233 = vpack.c.b16 %v1198, %v1197
    %v1234 = vpack.c.b16 %v1200, %v1199
    %v1235 = vpack.c.b16 %v1202, %v1201
    %v1236 = vpack.c.b16 %v1204, %v1203
    %1269 = vmatprep.subr.bf16.mxu0 0
    %1270 = vmatpush1.bf16.msra.mxu0 %v1205
    %1271 = vmatprep.subr.bf16.mxu0 0
    %1272 = vmatpush1.bf16.msra.mxu0 %v1206
    %1273 = vmatprep.subr.bf16.mxu0 0
    %1274 = vmatpush1.bf16.msra.mxu0 %v1207
    %1275 = vmatprep.subr.bf16.mxu0 0
    %1276 = vmatpush1.bf16.msra.mxu0 %v1208
    %1277 = vmatprep.subr.bf16.mxu0 0
    %1278 = vmatpush1.bf16.msra.mxu0 %v1209
    %1279 = vmatprep.subr.bf16.mxu0 0
    %1280 = vmatpush1.bf16.msra.mxu0 %v1210
    %1281 = vmatprep.subr.bf16.mxu0 0
    %1282 = vmatpush1.bf16.msra.mxu0 %v1211
    %1283 = vmatprep.subr.bf16.mxu0 0
    %1284 = vmatpush1.bf16.msra.mxu0 %v1212
    %1285 = vmatprep.subr.bf16.mxu0 0
    %1286 = vmatpush1.bf16.msra.mxu0 %v1213
    %1287 = vmatprep.subr.bf16.mxu0 0
    %1288 = vmatpush1.bf16.msra.mxu0 %v1214
    %1289 = vmatprep.subr.bf16.mxu0 0
    %1290 = vmatpush1.bf16.msra.mxu0 %v1215
    %1291 = vmatprep.subr.bf16.mxu0 0
    %1292 = vmatpush1.bf16.msra.mxu0 %v1216
    %1293 = vmatprep.subr.bf16.mxu0 0
    %1294 = vmatpush1.bf16.msra.mxu0 %v1217
    %1295 = vmatprep.subr.bf16.mxu0 0
    %1296 = vmatpush1.bf16.msra.mxu0 %v1218
    %1297 = vmatprep.subr.bf16.mxu0 0
    %1298 = vmatpush1.bf16.msra.mxu0 %v1219
    %1299 = vmatprep.subr.bf16.mxu0 0
    %1300 = vmatpush1.bf16.msra.mxu0 %v1220
    %1301 = vmatprep.mubr.bf16.mxu0 %v1003
    %1302 = vmatmul.mubr.bf16.gmra.mrb[0].mxu0 %v1002
    %v1303 = vpop.f32.mrb[0].mxu0
    %v1304 = vadd.f32 %v1075, %v1303
    %v1305 = vpop.f32.mrb[0].mxu0
    %v1306 = vpop.f32.mrb[0].mxu0
    %v1307 = vpop.f32.mrb[0].mxu0
    %1308 = vdwg.mxu0
    %1309 = vmatprep.subr.bf16.mxu0 0
    %1310 = vmatpush1.bf16.msra.mxu0 %v1221
    %1311 = vmatprep.subr.bf16.mxu0 0
    %1312 = vmatpush1.bf16.msra.mxu0 %v1222
    %1313 = vmatprep.subr.bf16.mxu0 0
    %1314 = vmatpush1.bf16.msra.mxu0 %v1223
    %1315 = vmatprep.subr.bf16.mxu0 0
    %1316 = vmatpush1.bf16.msra.mxu0 %v1224
    %1317 = vmatprep.subr.bf16.mxu0 0
    %1318 = vmatpush1.bf16.msra.mxu0 %v1225
    %1319 = vmatprep.subr.bf16.mxu0 0
    %1320 = vmatpush1.bf16.msra.mxu0 %v1226
    %1321 = vmatprep.subr.bf16.mxu0 0
    %1322 = vmatpush1.bf16.msra.mxu0 %v1227
    %1323 = vmatprep.subr.bf16.mxu0 0
    %1324 = vmatpush1.bf16.msra.mxu0 %v1228
    %1325 = vmatprep.subr.bf16.mxu0 0
    %1326 = vmatpush1.bf16.msra.mxu0 %v1229
    %1327 = vmatprep.subr.bf16.mxu0 0
    %1328 = vmatpush1.bf16.msra.mxu0 %v1230
    %1329 = vmatprep.subr.bf16.mxu0 0
    %1330 = vmatpush1.bf16.msra.mxu0 %v1231
    %1331 = vmatprep.subr.bf16.mxu0 0
    %1332 = vmatpush1.bf16.msra.mxu0 %v1232
    %1333 = vmatprep.subr.bf16.mxu0 0
    %1334 = vmatpush1.bf16.msra.mxu0 %v1233
    %1335 = vmatprep.subr.bf16.mxu0 0
    %1336 = vmatpush1.bf16.msra.mxu0 %v1234
    %1337 = vmatprep.subr.bf16.mxu0 0
    %1338 = vmatpush1.bf16.msra.mxu0 %v1235
    %1339 = vmatprep.subr.bf16.mxu0 0
    %1340 = vmatpush1.bf16.msra.mxu0 %v1236
    %1341 = vmatprep.mubr.bf16.mxu0 %v1005
    %1342 = vmatmul.mubr.bf16.gmra.mrb[0].mxu0 %v1004
    %v1343 = vpop.f32.mrb[0].mxu0
    %v1344 = vadd.f32 %v1304, %v1343
    %v1345 = vpop.f32.mrb[0].mxu0
    %v1346 = vpop.f32.mrb[0].mxu0
    %v1347 = vpop.f32.mrb[0].mxu0
    %1348 = vdwg.mxu0
    %vm1349 = vcmask 228352
    %1350 = vst.msk [vmem:[#allocation5] sm:$0xff] %vm1349, %v1344
    // Predicated region
    $region26: #{classifier_forward.1} parent=1 // pred_check
      _
    $region27: #{classifier_forward.1} parent=1 // pred_check_branch
      %1352 = sbr.rel (0) target = $region29
    $region28: #{classifier_forward.1} parent=1 // pred_region
      %s1354 = ssub.s32 128, 128
      %1355 = vsyncadd [#allocation4], %s1354
      %s1357 = sshll.u32 [#allocation5], 4
      %s1358 = int_to_ptr.vmem [resolvable:$true] %s1357
      %1360 = dma.vmem_to_hbm [thread:$0]  %s1358, 128, %s5, [#allocation4]
    $region29: #{classifier_forward.1} parent=1 // pred_fallthru
      _
    // Predicated region
    $region30: #{classifier_forward.1} parent=1 // pred_check
      _
    $region31: #{classifier_forward.1} parent=1 // pred_check_branch
      %1362 = sbr.rel (0) target = $region33
    $region32: #{classifier_forward.1} parent=1 // pred_region
      %1363 = dma.done [#allocation4], 128
    $region33: #{classifier_forward.1} parent=1 // pred_fallthru
      _
    %1364 = vsyncpa [#allocation3], 1
    %1365 = vsyncpa [#allocation4], 1

</llo_original>
